<compile_context>
chip_gen: v7x
topology: tpu7x:2x2x1
jax: 0.10.0
libtpu: 0.0.40
codegen_flags: <defaults>
</compile_context>

<pallas_src>
import functools

import jax
import jax.numpy as jnp
from jax.experimental import pallas as pl
from jax.experimental.pallas import tpu as pltpu


def _round_up(x, m):
    return -(-x // m) * m


# --------------------------------------------------------------------------- #
# RBF kernel                                                                   #
# --------------------------------------------------------------------------- #
def _mmd_rbf_tile_kernel(scale_ref, rows_ref, cols_ref, rowside_ref, colside_ref,
                         out_ref, acc_ref, *, kernel_mul, kernel_num):
    """One (tm x tn) block: MXU gram -> l2 -> exp ladder -> weighted row-fold
    into the per-row-block VMEM accumulator; finalize to out at last col step."""
    j = pl.program_id(1)

    @pl.when(j == 0)
    def _init():
        acc_ref[...] = jnp.zeros_like(acc_ref)

    x = rows_ref[...]                      # (tm, D)
    y = cols_ref[...]                      # (tn, D)

    # x @ y.T as a contraction over dim 1 of both operands (no materialized
    # transpose), accumulated in f32 on the MXU.
    gram = jax.lax.dot_general(
        x, y, dimension_numbers=(((1,), (1,)), ((), ())),
        preferred_element_type=jnp.float32)                     # (tm, tn) f32

    rs = rowside_ref[...]                  # (tm, 2): [:,0]=||x||^2, [:,1]=u
    cs = colside_ref[...]                  # (2, tn): [0,:]=||x||^2, [1,:]=u
    sq_r = rs[:, 0:1]                      # (tm, 1)
    u_r = rs[:, 1:2]                       # (tm, 1)
    sq_c = cs[0:1, :]                      # (1, tn)
    u_c = cs[1:2, :]                       # (1, tn)

    # ||x_i - y_j||^2 via Gram identity on mean-centered data; clamp at 0 so
    # kernel values never exceed 1 (matches the diff-based reference).
    l2 = jnp.maximum(sq_r + sq_c - 2.0 * gram, 0.0)

    neg_inv_bw = scale_ref[0]              # = -1 / (bandwidth / mul**(num//2))

    if float(kernel_mul) == 2.0:
        # One EUP exp for the widest bandwidth, then repeated squaring (VPU):
        # exp(-l2/(bw*2^m)) = r^(2^(kernel_num-1-m)), r = exp(-l2/(bw*2^(k-1))).
        r = jnp.exp(l2 * (neg_inv_bw * (0.5 ** (kernel_num - 1))))
        ksum = r
        cur = r
        for _ in range(kernel_num - 1):
            cur = cur * cur
            ksum = ksum + cur
    else:
        # General bandwidth ladder: one exp per term, scaled by scalar factors
        # (never divide the (tm, tn) tile).
        ksum = jnp.exp(l2 * neg_inv_bw)
        for q in range(1, kernel_num):
            ksum = ksum + jnp.exp(l2 * (neg_inv_bw * (float(kernel_mul) ** (-q))))

    # sum_{a,b} K_ab u_a u_b: column weights first (lane broadcast), lane
    # reduce to (tm, 1), then row weights folded into the scratch accumulator.
    row_partial = jnp.sum(ksum * u_c, axis=1, keepdims=True)   # (tm, 1)
    acc_ref[...] += row_partial * u_r

    @pl.when(j == pl.num_programs(1) - 1)
    def _finalize():
        out_ref[...] = jnp.reshape(jnp.sum(acc_ref[...]), (1, 1, 1))


def _choose_tiles(n, d, itemsize=4):
    """Pick (tm, tn, n_pad). Budget ~24 MiB so double-buffered streams plus
    the (tm, tn) f32 intermediates stay under the 32 MiB scoped VMEM limit
    (valid on v5e/v6e/v7x)."""
    n8 = _round_up(max(n, 8), 8)
    budget = 24 * 1024 * 1024
    row_bytes = d * itemsize

    # Single block: one grid step, zero padding waste beyond sublane rounding.
    single_need = 4 * n8 * row_bytes + 6 * n8 * n8 * 4
    if n8 <= 512 and single_need <= budget:
        return n8, n8, n8

    # Tiled path: column tile fixed at 256 (one full MXU pass); row tile as
    # large as helps (columns are re-fetched n_pad/tm times, rows only once),
    # traded against padding waste.
    tn = 256
    best = None
    for cand in (256, 512, 1024):
        need = 2 * cand * row_bytes + 2 * tn * row_bytes + 6 * cand * tn * 4
        if need > budget:
            continue
        n_pad_c = _round_up(n8, cand)
        # rough cost: padded elementwise work + column-stream HBM re-fetches
        cost = n_pad_c * n_pad_c + (n_pad_c // cand) * n_pad_c * d
        if best is None or cost < best[0]:
            best = (cost, cand, n_pad_c)
    if best is None:
        # TODO(synk): very large feature dims should add a K grid axis over D
        # with a (tm, tn) f32 gram scratch instead of shrinking the tiles.
        return 128, 128, _round_up(n8, 128)
    _, tm, n_pad = best
    return tm, tn, n_pad


def _rbf_mmd(source, target, kernel_mul, kernel_num):
    bs, d = source.shape
    bt, d_t = target.shape
    if d != d_t:
        raise ValueError("source/target feature dims must match")
    n = bs + bt

    # ---- O(N*D) prologue (plain JAX): centering, row norms, bandwidth -------
    # TODO(synk): optional bf16 streaming of `centered` would halve HBM/VMEM
    # traffic but amplifies Gram-identity cancellation; kept f32 for accuracy.
    s32 = source.astype(jnp.float32)
    t32 = target.astype(jnp.float32)
    total32 = jnp.concatenate([s32, t32], axis=0)                   # (n, d)
    mu = jnp.mean(total32, axis=0, keepdims=True)
    centered = total32 - mu                                         # distances unchanged
    row_sq = jnp.sum(centered * centered, axis=1)                   # (n,)
    # sum_{a,b} ||x_a - x_b||^2 = 2*N*sum_a ||x_a - mu||^2  (cross term vanishes)
    sum_l2 = 2.0 * n * jnp.sum(row_sq)
    bandwidth = sum_l2 / float(n * n - n)
    bandwidth = bandwidth / (float(kernel_mul) ** (kernel_num // 2))
    neg_inv_bw = jnp.reshape((-1.0 / bandwidth).astype(jnp.float32), (1,))

    # ---- tiling / padding ----------------------------------------------------
    tm, tn, n_pad = _choose_tiles(n, d)
    nblk_i = n_pad // tm
    nblk_j = n_pad // tn

    if n_pad != n:
        centered = jnp.pad(centered, ((0, n_pad - n), (0, 0)))
        row_sq = jnp.pad(row_sq, (0, n_pad - n))

    # Signed / normalized quadrant weights: +1/bs, -1/bt, 0 (padding).
    u = jnp.concatenate([jnp.full((bs,), 1.0 / bs, jnp.float32),
                         jnp.full((bt,), -1.0 / bt, jnp.float32),
                         jnp.zeros((n_pad - n,), jnp.float32)], axis=0)

    row_side = jnp.stack([row_sq, u], axis=1)                       # (n_pad, 2)
    col_side = jnp.stack([row_sq, u], axis=0)                       # (2, n_pad)

    kern = functools.partial(_mmd_rbf_tile_kernel,
                             kernel_mul=float(kernel_mul),
                             kernel_num=int(kernel_num))

    partials = pl.pallas_call(
        kern,
        out_shape=jax.ShapeDtypeStruct((nblk_i, 1, 1), jnp.float32),
        grid=(nblk_i, nblk_j),
        in_specs=[
            pl.BlockSpec(memory_space=pltpu.MemorySpace.SMEM),      # -1/bandwidth
            pl.BlockSpec((tm, d), lambda i, j: (i, 0)),             # row block (resident over j)
            pl.BlockSpec((tn, d), lambda i, j: (j, 0)),             # col block (streamed)
            pl.BlockSpec((tm, 2), lambda i, j: (i, 0)),             # [sq, u] rows
            pl.BlockSpec((2, tn), lambda i, j: (0, j)),             # [sq, u] cols
        ],
        out_specs=pl.BlockSpec((1, 1, 1), lambda i, j: (i, 0, 0)),  # one partial per row-block
        scratch_shapes=[pltpu.VMEM((tm, 1), jnp.float32)],
        compiler_params=pltpu.CompilerParams(
            # Row-block axis is independent (per-i partials) -> megacore split
            # on v7x; the column/reduction axis stays "arbitrary".
            dimension_semantics=("parallel", "arbitrary"),
            vmem_limit_bytes=32 * 1024 * 1024,
        ),
    )(neg_inv_bw, centered, centered, row_side, col_side)
    return jnp.sum(partials)


# --------------------------------------------------------------------------- #
# Linear kernel                                                                #
# --------------------------------------------------------------------------- #
def _linear_mmd_kernel(rows_ref, w_ref, out_ref, acc_ref):
    """linear_mmd2 = ||mean(X,0) - mean(Y,0)||^2, streamed over row tiles with
    a resident (1, D) weighted-column-sum accumulator."""
    i = pl.program_id(0)

    @pl.when(i == 0)
    def _init():
        acc_ref[...] = jnp.zeros_like(acc_ref)

    acc_ref[...] += jnp.sum(rows_ref[...] * w_ref[...], axis=0, keepdims=True)

    @pl.when(i == pl.num_programs(0) - 1)
    def _finalize():
        delta = acc_ref[...]
        out_ref[...] = jnp.reshape(jnp.sum(delta * delta), (1, 1))


def _linear_mmd(source, target):
    bs, d = source.shape
    bt, d_t = target.shape
    if d != d_t:
        raise ValueError("source/target feature dims must match")
    n = bs + bt
    s32 = source.astype(jnp.float32)
    t32 = target.astype(jnp.float32)
    total = jnp.concatenate([s32, t32], axis=0)

    n8 = _round_up(max(n, 8), 8)
    tm = n8 if n8 <= 512 else 256
    n_pad = _round_up(n8, tm)
    if n_pad != n:
        total = jnp.pad(total, ((0, n_pad - n), (0, 0)))
    w = jnp.concatenate([jnp.full((bs,), 1.0 / bs, jnp.float32),
                         jnp.full((bt,), -1.0 / bt, jnp.float32),
                         jnp.zeros((n_pad - n,), jnp.float32)]).reshape(n_pad, 1)

    out = pl.pallas_call(
        _linear_mmd_kernel,
        out_shape=jax.ShapeDtypeStruct((1, 1), jnp.float32),
        grid=(n_pad // tm,),
        in_specs=[pl.BlockSpec((tm, d), lambda i: (i, 0)),
                  pl.BlockSpec((tm, 1), lambda i: (i, 0))],
        out_specs=pl.BlockSpec((1, 1), lambda i: (0, 0)),
        scratch_shapes=[pltpu.VMEM((1, d), jnp.float32)],
        compiler_params=pltpu.CompilerParams(
            dimension_semantics=("arbitrary",),
            vmem_limit_bytes=32 * 1024 * 1024,
        ),
    )(total, w)
    return out[0, 0]


# --------------------------------------------------------------------------- #
# Module wrapper                                                               #
# --------------------------------------------------------------------------- #
class MMDLossPallas:
    """JAX/Pallas port of the PyTorch MMD_loss module (no learnable params)."""

    def __init__(self, kernel_type="rbf", kernel_mul=2.0, kernel_num=5):
        self.kernel_type = kernel_type
        self.kernel_mul = float(kernel_mul)
        self.kernel_num = int(kernel_num)
        self.fix_sigma = None  # TODO(synk): fix_sigma is always None in the reference __init__; not plumbed.

    def __call__(self, source, target):
        if self.kernel_type == "linear":
            return _linear_mmd(source, target)
        elif self.kernel_type == "rbf":
            return _rbf_mmd(source, target, self.kernel_mul, self.kernel_num)
        else:
            raise ValueError(f"unknown kernel_type: {self.kernel_type}")


# --------------------------------------------------------------------------- #
# Pure-JAX references (mirror the PyTorch forward)                             #
# --------------------------------------------------------------------------- #
def _mmd_reference(source, target, kernel_mul=2.0, kernel_num=5):
    b = source.shape[0]
    total = jnp.concatenate([source, target], axis=0).astype(jnp.float32)
    n = total.shape[0]
    diff = total[None, :, :] - total[:, None, :]
    l2 = jnp.sum(diff * diff, axis=2)
    bandwidth = jnp.sum(l2) / (n * n - n)
    bandwidth = bandwidth / (kernel_mul ** (kernel_num // 2))
    kernels = sum(jnp.exp(-l2 / (bandwidth * kernel_mul ** i)) for i in range(kernel_num))
    xx = jnp.mean(kernels[:b, :b])
    yy = jnp.mean(kernels[b:, b:])
    xy = jnp.mean(kernels[:b, b:])
    yx = jnp.mean(kernels[b:, :b])
    return xx + yy - xy - yx


def _linear_reference(source, target):
    delta = jnp.mean(source.astype(jnp.float32), axis=0) - jnp.mean(target.astype(jnp.float32), axis=0)
    return jnp.dot(delta, delta)


if __name__ == "__main__":
    key = jax.random.PRNGKey(0)
    k1, k2, k3, k4, k5, k6 = jax.random.split(key, 6)

    mmd = MMDLossPallas(kernel_type="rbf", kernel_mul=2.0, kernel_num=5)

    # Case 1: tiny module-scale shapes (single-block path), batch=2, hidden=32.
    batch, hidden = 2, 32
    source = jax.random.normal(k1, (batch, hidden), dtype=jnp.float32)
    target = 0.5 * jax.random.normal(k2, (batch, hidden), dtype=jnp.float32) + 1.0
    loss_small = jax.block_until_ready(mmd(source, target))
    ref_small = jax.block_until_ready(_mmd_reference(source, target))
    assert jnp.allclose(loss_small, ref_small, rtol=1e-4, atol=1e-4), (loss_small, ref_small)

    # Case 2: mid-size N=272 -> adaptive single 272x272 block (no padding waste).
    batch2, hidden2 = 136, 64
    source2 = jax.random.normal(k3, (batch2, hidden2), dtype=jnp.float32)
    target2 = 0.5 * jax.random.normal(k4, (batch2, hidden2), dtype=jnp.float32) + 1.0
    loss_mid = jax.block_until_ready(mmd(source2, target2))
    ref_mid = jax.block_until_ready(_mmd_reference(source2, target2))
    assert jnp.allclose(loss_mid, ref_mid, rtol=1e-3, atol=1e-4), (loss_mid, ref_mid)

    # Case 3: N=640 -> tiled path (tn=256, padded to 768, 3x3 grid, per-row-block
    # partial outputs, megacore-parallel row axis, padding + quadrant masks).
    batch3, hidden3 = 320, 48
    source3 = jax.random.normal(k5, (batch3, hidden3), dtype=jnp.float32)
    target3 = 0.5 * jax.random.normal(k6, (batch3, hidden3), dtype=jnp.float32) + 1.0
    loss_big = jax.block_until_ready(mmd(source3, target3))
    ref_big = jax.block_until_ready(_mmd_reference(source3, target3))
    assert jnp.allclose(loss_big, ref_big, rtol=1e-3, atol=1e-4), (loss_big, ref_big)

    # Case 4: linear kernel path (tiled row-streaming kernel).
    mmd_lin = MMDLossPallas(kernel_type="linear")
    loss_lin = jax.block_until_ready(mmd_lin(source, target))
    ref_lin = jax.block_until_ready(_linear_reference(source, target))
    assert jnp.allclose(loss_lin, ref_lin, rtol=1e-4, atol=1e-5), (loss_lin, ref_lin)

    print("KERNEL_OK")
</pallas_src>

<mosaic_0001>
module attributes {stable_mosaic.version = 11 : i64} {
  func.func @_mmd_rbf_tile_kernel(%arg0: i32, %arg1: i32, %arg2: memref<1xf32, #tpu.memory_space<smem>>, %arg3: memref<8x32xf32, #tpu.memory_space<vmem>>, %arg4: memref<8x32xf32, #tpu.memory_space<vmem>>, %arg5: memref<8x2xf32, #tpu.memory_space<vmem>>, %arg6: memref<2x8xf32, #tpu.memory_space<vmem>>, %arg7: memref<1x1x1xf32, #tpu.memory_space<vmem>>, %arg8: memref<8x1xf32, #tpu.memory_space<vmem>>) attributes {dimension_semantics = [#tpu.dimension_semantics<parallel>, #tpu.dimension_semantics<arbitrary>], iteration_bounds = array<i64: 1, 1>, scalar_prefetch = 0 : i64, scratch_operands = 1 : i64, tpu.core_type = #tpu.core_type<tc>, window_params = [{transform_indices = @transform_0, window_bounds = array<i64: 1>}, {transform_indices = @transform_1, window_bounds = array<i64: 8, 32>}, {transform_indices = @transform_2, window_bounds = array<i64: 8, 32>}, {transform_indices = @transform_3, window_bounds = array<i64: 8, 2>}, {transform_indices = @transform_4, window_bounds = array<i64: 2, 8>}, {transform_indices = @transform_5, window_bounds = array<i64: 1, 1, 1>}]} {
    %c0_i32 = arith.constant 0 : i32
    %0 = arith.cmpi eq, %arg1, %c0_i32 : i32
    %1 = arith.extui %0 : i1 to i32
    %c0_i32_0 = arith.constant 0 : i32
    %2 = arith.cmpi ne, %1, %c0_i32_0 : i32
    scf.if %2 {
      %cst_19 = arith.constant 0.000000e+00 : f32
      %44 = vector.broadcast %cst_19 : f32 to vector<8x1xf32>
      %c0_20 = arith.constant 0 : index
      %c0_21 = arith.constant 0 : index
      %45 = vector.load %arg8[%c0_20, %c0_21] : memref<8x1xf32, #tpu.memory_space<vmem>>, vector<8x1xf32>
      tpu.vector_store %arg8[%c0_20, %c0_21], %44 {strides = array<i32>} : memref<8x1xf32, #tpu.memory_space<vmem>>, vector<8x1xf32>,
    } else {
    }
    %c0 = arith.constant 0 : index
    %c0_1 = arith.constant 0 : index
    %3 = vector.load %arg3[%c0, %c0_1] : memref<8x32xf32, #tpu.memory_space<vmem>>, vector<8x32xf32>
    %c0_2 = arith.constant 0 : index
    %c0_3 = arith.constant 0 : index
    %4 = vector.load %arg4[%c0_2, %c0_3] : memref<8x32xf32, #tpu.memory_space<vmem>>, vector<8x32xf32>
    %cst = arith.constant dense<0.000000e+00> : vector<8x8xf32>
    %5 = tpu.matmul %3, %4, %cst {dimension_numbers = #tpu.dot_dimension_numbers<[1], [1], [0], [0], [0, 0, 1, 0], [], []>} : vector<8x32xf32>, vector<8x32xf32>, vector<8x8xf32> -> vector<8x8xf32>
    %c0_4 = arith.constant 0 : index
    %c0_5 = arith.constant 0 : index
    %6 = vector.load %arg5[%c0_4, %c0_5] : memref<8x2xf32, #tpu.memory_space<vmem>>, vector<8x2xf32>
    %c0_6 = arith.constant 0 : index
    %c0_7 = arith.constant 0 : index
    %7 = vector.load %arg6[%c0_6, %c0_7] : memref<2x8xf32, #tpu.memory_space<vmem>>, vector<2x8xf32>
    %8 = vector.extract_strided_slice %6 {offsets = [0, 0], sizes = [8, 1], strides = [1, 1]} : vector<8x2xf32> to vector<8x1xf32>
    %9 = vector.extract_strided_slice %6 {offsets = [0, 1], sizes = [8, 1], strides = [1, 1]} : vector<8x2xf32> to vector<8x1xf32>
    %10 = vector.extract_strided_slice %7 {offsets = [0, 0], sizes = [1, 8], strides = [1, 1]} : vector<2x8xf32> to vector<1x8xf32>
    %11 = vector.extract_strided_slice %7 {offsets = [1, 0], sizes = [1, 8], strides = [1, 1]} : vector<2x8xf32> to vector<1x8xf32>
    %12 = vector.broadcast %8 : vector<8x1xf32> to vector<8x8xf32>
    %13 = vector.broadcast %10 : vector<1x8xf32> to vector<8x8xf32>
    %14 = arith.addf %12, %13 : vector<8x8xf32>
    %cst_8 = arith.constant 2.000000e+00 : f32
    %15 = vector.broadcast %cst_8 : f32 to vector<8x8xf32>
    %16 = arith.mulf %15, %5 : vector<8x8xf32>
    %17 = arith.subf %14, %16 : vector<8x8xf32>
    %cst_9 = arith.constant 0.000000e+00 : f32
    %18 = vector.broadcast %cst_9 : f32 to vector<8x8xf32>
    %19 = arith.maximumf %17, %18 : vector<8x8xf32>
    %c0_10 = arith.constant 0 : index
    %20 = memref.load %arg2[%c0_10] : memref<1xf32, #tpu.memory_space<smem>>
    %cst_11 = arith.constant 6.250000e-02 : f32
    %21 = arith.mulf %20, %cst_11 : f32
    %22 = vector.broadcast %21 : f32 to vector<8x8xf32>
    %23 = arith.mulf %19, %22 : vector<8x8xf32>
    %24 = math.exp %23 : vector<8x8xf32>
    %25 = arith.mulf %24, %24 : vector<8x8xf32>
    %26 = arith.addf %24, %25 : vector<8x8xf32>
    %27 = arith.mulf %25, %25 : vector<8x8xf32>
    %28 = arith.addf %26, %27 : vector<8x8xf32>
    %29 = arith.mulf %27, %27 : vector<8x8xf32>
    %30 = arith.addf %28, %29 : vector<8x8xf32>
    %31 = arith.mulf %29, %29 : vector<8x8xf32>
    %32 = arith.addf %30, %31 : vector<8x8xf32>
    %33 = vector.broadcast %11 : vector<1x8xf32> to vector<8x8xf32>
    %34 = arith.mulf %32, %33 : vector<8x8xf32>
    %cst_12 = arith.constant dense<0.000000e+00> : vector<8xf32>
    %35 = vector.multi_reduction <add>, %34, %cst_12 [1] : vector<8x8xf32> to vector<8xf32>
    %36 = vector.shape_cast %35 : vector<8xf32> to vector<8x1xf32>
    %c0_13 = arith.constant 0 : index
    %c0_14 = arith.constant 0 : index
    %37 = vector.load %arg8[%c0_13, %c0_14] : memref<8x1xf32, #tpu.memory_space<vmem>>, vector<8x1xf32>
    %38 = arith.mulf %36, %9 : vector<8x1xf32>
    %39 = arith.addf %37, %38 : vector<8x1xf32>
    %c0_15 = arith.constant 0 : index
    %c0_16 = arith.constant 0 : index
    %40 = vector.load %arg8[%c0_15, %c0_16] : memref<8x1xf32, #tpu.memory_space<vmem>>, vector<8x1xf32>
    tpu.vector_store %arg8[%c0_15, %c0_16], %39 {strides = array<i32>} : memref<8x1xf32, #tpu.memory_space<vmem>>, vector<8x1xf32>,
    %c0_i32_17 = arith.constant 0 : i32
    %41 = arith.cmpi eq, %arg1, %c0_i32_17 : i32
    %42 = arith.extui %41 : i1 to i32
    %c0_i32_18 = arith.constant 0 : i32
    %43 = arith.cmpi ne, %42, %c0_i32_18 : i32
    scf.if %43 {
      %c0_19 = arith.constant 0 : index
      %c0_20 = arith.constant 0 : index
      %44 = vector.load %arg8[%c0_19, %c0_20] : memref<8x1xf32, #tpu.memory_space<vmem>>, vector<8x1xf32>
      %45 = vector.shape_cast %44 : vector<8x1xf32> to vector<1x8x1xf32>
      %cst_21 = arith.constant dense<0.000000e+00> : vector<1xf32>
      %46 = vector.multi_reduction <add>, %45, %cst_21 [1, 2] : vector<1x8x1xf32> to vector<1xf32>
      %47 = vector.shape_cast %46 : vector<1xf32> to vector<1x1x1xf32>
      %48 = vector.extract %47[0, 0, 0] : f32 from vector<1x1x1xf32>
      %49 = vector.broadcast %48 : f32 to vector<1x1x1xf32>
      %c0_22 = arith.constant 0 : index
      %c0_23 = arith.constant 0 : index
      %c0_24 = arith.constant 0 : index
      %50 = vector.load %arg7[%c0_22, %c0_23, %c0_24] : memref<1x1x1xf32, #tpu.memory_space<vmem>>, vector<1x1x1xf32>
      tpu.vector_store %arg7[%c0_22, %c0_23, %c0_24], %49 {strides = array<i32>} : memref<1x1x1xf32, #tpu.memory_space<vmem>>, vector<1x1x1xf32>,
    } else {
    }
    return
  }
  func.func @transform_0(%arg0: i32, %arg1: i32) -> i32 {
    %c0_i32 = arith.constant 0 : i32
    %c0_i32_0 = arith.constant 0 : i32
    return %c0_i32 : i32
  }
  func.func @transform_1(%arg0: i32, %arg1: i32) -> (i32, i32) {
    %c0_i32 = arith.constant 0 : i32
    %c0_i32_0 = arith.constant 0 : i32
    return %arg0, %c0_i32 : i32, i32
  }
  func.func @transform_2(%arg0: i32, %arg1: i32) -> (i32, i32) {
    %c0_i32 = arith.constant 0 : i32
    %c0_i32_0 = arith.constant 0 : i32
    return %arg1, %c0_i32 : i32, i32
  }
  func.func @transform_3(%arg0: i32, %arg1: i32) -> (i32, i32) {
    %c0_i32 = arith.constant 0 : i32
    %c0_i32_0 = arith.constant 0 : i32
    return %arg0, %c0_i32 : i32, i32
  }
  func.func @transform_4(%arg0: i32, %arg1: i32) -> (i32, i32) {
    %c0_i32 = arith.constant 0 : i32
    %c0_i32_0 = arith.constant 0 : i32
    return %c0_i32, %arg1 : i32, i32
  }
  func.func @transform_5(%arg0: i32, %arg1: i32) -> (i32, i32, i32) {
    %c0_i32 = arith.constant 0 : i32
    %c0_i32_0 = arith.constant 0 : i32
    %c0_i32_1 = arith.constant 0 : i32
    return %arg0, %c0_i32, %c0_i32_0 : i32, i32, i32
  }
}

</mosaic_0001>

<llo_original>
// kernel: tpu_custom_call.1
$region0: #{tpu_custom_call.1}
  #allocation0 [shape = 'u32[]', space=smem, size = 0x4, offset = 0x4, fixed_abs, tag = 'smem constant byte address 0x4 - core index']
  #allocation1 [shape = 'u32[144,128]{1,0:T(1,128)}', space=vmem, size = 0x12000, scoped, tag = 'internal scratch']
  #allocation2 [shape = 'f32[8,1]{1,0:T(8,128)}', space=vmem, size = 0x1000, scoped, tag = 'scratch operand']
  #allocation3 [shape = 'f32[1]{0:T(128)S(6)}', space=smem, size = 0x200, scoped, tag = 'scoped memory for tpu_custom_call.1']
  %s0 = inlined_call_operand.<no memory space> [shape: f32[1], index: 0, kind: input, shape index: {}]
  %s1 = inlined_call_operand.vmem [shape: f32[8,32], index: 1, kind: input, shape index: {}]
  %s2 = inlined_call_operand.vmem [shape: f32[8,32], index: 2, kind: input, shape index: {}]
  %s3 = inlined_call_operand.vmem [shape: f32[8,2], index: 3, kind: input, shape index: {}]
  %s4 = inlined_call_operand.vmem [shape: f32[2,8], index: 4, kind: input, shape index: {}]
  %s5 = inlined_call_operand.hbm [shape: f32[1,1,1], index: 5, kind: output, shape index: {}]
  %s6 = sld [smem:[#allocation0]]
  $region38: #{tpu_custom_call.1} parent=0
    _
  %s8 = ssub.s32 1, %s6
  %s9 = scalar_select 0, %s8, %s6
  %10 = sst [smem:[#allocation3]] %s0
  $region1: #{tpu_custom_call.1} parent=0
    #allocation4 [shape = 'u8[512]{0}', space=vmem, size = 0x400, scoped, tag = 'output window, operand 0, single buffered']
    #allocation5 [shape = 's32[1]{0}', space=sflag, size = 0x4, scoped, tag = 'scoped memory for tpu_custom_call.1']
    %11 = vsyncpa [#allocation5], 0
    // Predicated region
    $region2: #{tpu_custom_call.1} parent=1 // pred_check
      _
    $region3: #{tpu_custom_call.1} parent=1 // pred_check_branch
      %13 = sbr.rel (0) target = $region5
    $region4: #{tpu_custom_call.1} parent=1 // pred_region
      _
    $region5: #{tpu_custom_call.1} parent=1 // pred_fallthru
      _
    // Predicated region
    $region6: #{tpu_custom_call.1} parent=1 // pred_check
      _
    $region7: #{tpu_custom_call.1} parent=1 // pred_check_branch
      %15 = sbr.rel (0) target = $region9
    $region8: #{tpu_custom_call.1} parent=1 // pred_region
      _
    $region9: #{tpu_custom_call.1} parent=1 // pred_fallthru
      _
    // Predicated region
    $region10: #{tpu_custom_call.1} parent=1 // pred_check
      _
    $region11: #{tpu_custom_call.1} parent=1 // pred_check_branch
      %17 = sbr.rel (0) target = $region13
    $region12: #{tpu_custom_call.1} parent=1 // pred_region
      _
    $region13: #{tpu_custom_call.1} parent=1 // pred_fallthru
      _
    // Predicated region
    $region14: #{tpu_custom_call.1} parent=1 // pred_check
      _
    $region15: #{tpu_custom_call.1} parent=1 // pred_check_branch
      %19 = sbr.rel (0) target = $region17
    $region16: #{tpu_custom_call.1} parent=1 // pred_region
      _
    $region17: #{tpu_custom_call.1} parent=1 // pred_fallthru
      _
    // Predicated region
    $region18: #{tpu_custom_call.1} parent=1 // pred_check
      _
    $region19: #{tpu_custom_call.1} parent=1 // pred_check_branch
      %21 = sbr.rel (0) target = $region21
    $region20: #{tpu_custom_call.1} parent=1 // pred_region
      _
    $region21: #{tpu_custom_call.1} parent=1 // pred_fallthru
      _
    %p22 = scmp.eq.s32.totalorder 0, 0
    // Predicated region
    $region22: #{tpu_custom_call.1} parent=1 // pred_check
      %p23 = pneg %p22
    $region23: #{tpu_custom_call.1} parent=1 // pred_check_branch
      %25 = sbr.rel (%p23) target = $region25
    $region24: #{tpu_custom_call.1} parent=1 // pred_region
      %vm26 = vcmask 7168
      %27 = vst.msk [vmem:[#allocation2] sm:$0xff] %vm26, 0.0
    $region25: #{tpu_custom_call.1} parent=1 // pred_fallthru
      _
    %v28 = vld [vmem:[%s1] sm:$0xff]
    %v29 = vld [vmem:[%s2] sm:$0xff]
    %vm30 = vcmask 261120
    %v32 = vsel %vm30, %v28, 0
    %v35 = vsel %vm30, %v29, 0
    %37 = vmatprep.subr.mxu0 0.0
    %38 = vmatpush1.xpose.msra.mxu0 %v35
    %39 = vmatprep.subr.mxu0 0.0
    %40 = vmatpush1.xpose.msra.mxu0 0.0
    %41 = vmatprep.subr.mxu0 0.0
    %42 = vmatpush1.xpose.msra.mxu0 0.0
    %43 = vmatprep.subr.mxu0 0.0
    %44 = vmatpush1.xpose.msra.mxu0 0.0
    %45 = vmatprep.subr.mxu0 0.0
    %46 = vmatpush1.xpose.msra.mxu0 0.0
    %47 = vmatprep.subr.mxu0 0.0
    %48 = vmatpush1.xpose.msra.mxu0 0.0
    %49 = vmatprep.subr.mxu0 0.0
    %50 = vmatpush1.xpose.msra.mxu0 0.0
    %51 = vmatprep.subr.mxu0 0.0
    %52 = vmatpush1.xpose.msra.mxu0 0.0
    %53 = vmatprep.subr.mxu0 0.0
    %54 = vmatpush1.xpose.msra.mxu0 0.0
    %55 = vmatprep.subr.mxu0 0.0
    %56 = vmatpush1.xpose.msra.mxu0 0.0
    %57 = vmatprep.subr.mxu0 0.0
    %58 = vmatpush1.xpose.msra.mxu0 0.0
    %59 = vmatprep.subr.mxu0 0.0
    %60 = vmatpush1.xpose.msra.mxu0 0.0
    %61 = vmatprep.subr.mxu0 0.0
    %62 = vmatpush1.xpose.msra.mxu0 0.0
    %63 = vmatprep.subr.mxu0 0.0
    %64 = vmatpush1.xpose.msra.mxu0 0.0
    %65 = vmatprep.subr.mxu0 0.0
    %66 = vmatpush1.xpose.msra.mxu0 0.0
    %67 = vmatprep.subr.mxu0 0.0
    %68 = vmatpush1.xpose.msra.mxu0 0.0
    %69 = vmatprep.subr.mxu0 0.0
    %70 = vmatpush1.xpose.msra.mxu0 0.0
    %71 = vmatprep.subr.mxu0 0.0
    %72 = vmatpush1.xpose.msra.mxu0 0.0
    %73 = vmatprep.subr.mxu0 0.0
    %74 = vmatpush1.xpose.msra.mxu0 0.0
    %75 = vmatprep.subr.mxu0 0.0
    %76 = vmatpush1.xpose.msra.mxu0 0.0
    %77 = vmatprep.subr.mxu0 0.0
    %78 = vmatpush1.xpose.msra.mxu0 0.0
    %79 = vmatprep.subr.mxu0 0.0
    %80 = vmatpush1.xpose.msra.mxu0 0.0
    %81 = vmatprep.subr.mxu0 0.0
    %82 = vmatpush1.xpose.msra.mxu0 0.0
    %83 = vmatprep.subr.mxu0 0.0
    %84 = vmatpush1.xpose.msra.mxu0 0.0
    %85 = vmatprep.subr.mxu0 0.0
    %86 = vmatpush1.xpose.msra.mxu0 0.0
    %87 = vmatprep.subr.mxu0 0.0
    %88 = vmatpush1.xpose.msra.mxu0 0.0
    %89 = vmatprep.subr.mxu0 0.0
    %90 = vmatpush1.xpose.msra.mxu0 0.0
    %91 = vmatprep.subr.mxu0 0.0
    %92 = vmatpush1.xpose.msra.mxu0 0.0
    %93 = vmatprep.subr.mxu0 0.0
    %94 = vmatpush1.xpose.msra.mxu0 0.0
    %95 = vmatprep.subr.mxu0 0.0
    %96 = vmatpush1.xpose.msra.mxu0 0.0
    %97 = vmatprep.subr.mxu0 0.0
    %98 = vmatpush1.xpose.msra.mxu0 0.0
    %99 = vmatprep.subr.mxu0 0.0
    %100 = vmatpush1.xpose.msra.mxu0 0.0
    %101 = vmatprep.mubr.f32.mxu0 0.0
    %102 = vmatmul.mubr.f32.gmra.mrb[0].mxu0 %v32
    %v103 = vpop.f32.mrb[0].mxu0
    %v104 = vadd.f32 0.0, %v103
    %v105 = vpop.f32.mrb[0].mxu0
    %106 = vdwg.mxu0
    %v107 = vld [vmem:[%s3] sm:$0xff]
    %v108 = vld [vmem:[%s4] sm:$0x3]
    %110 = vset.pattern.permute.xlu0 0
    %111 = vperm.xlu0 %110, %v107
    %v112 = vpop.permute.xlu0 %111
    %v114 = vlaneseq
    %v115 = vshrl.u32 %v114, 7
    %v116 = vsub.s32 0, %v115
    %v117 = vrot.slane %v108, %v116
    %v118 = vadd.f32 %v112, %v117
    %v119 = vmul.f32 %v104, 2.0
    %v120 = vsub.f32 %v118, %v119
    %v121 = vmax.f32 %v120, 0.0
    %s122 = sld [smem:[#allocation3]]
    %s123 = smul.f32 %s122, 0.0625
    %v124 = vstv %s123
    %v125 = vmul.f32 %v121, %v124
    %v126 = vmul.f32 %v125, 1.442695
    %v127 = vpow.pop %v126
    %v128 = vmul.f32 %v127, %v127
    %v129 = vadd.f32 %v127, %v128
    %v130 = vmul.f32 %v128, %v128
    %v131 = vadd.f32 %v129, %v130
    %v132 = vmul.f32 %v130, %v130
    %v133 = vadd.f32 %v131, %v132
    %v134 = vmul.f32 %v132, %v132
    %v135 = vadd.f32 %v133, %v134
    %v136 = vlaneseq
    %v137 = vshrl.u32 %v136, 7
    %v138 = vsub.s32 1, %v137
    %v139 = vrot.slane %v108, %v138
    %v140 = vmul.f32 %v135, %v139
    %vm141 = vcmask 64512
    %v142 = vsel %vm141, %v140, 0.0
    %143 = vadd.xlane.f32.xlu0 %v142
    %v144 = vpop.xlane.xlu0 %143
    %v145 = vld [vmem:[#allocation2] sm:$0xff]
    %v146 = vmul.f32 %v144, %v107
    %148 = vrot.lane.b32.xlu0 %v146, 127
    %v149 = vpop.permute.xlu0 %148
    %v151 = vadd.f32 %v145, %v149
    %vm152 = vcmask 7168
    %153 = vst.msk [vmem:[#allocation2] sm:$0xff] %vm152, %v151
    // Predicated region
    $region26: #{tpu_custom_call.1} parent=1 // pred_check
      %p154 = pneg %p22
    $region27: #{tpu_custom_call.1} parent=1 // pred_check_branch
      %156 = sbr.rel (%p154) target = $region29
    $region28: #{tpu_custom_call.1} parent=1 // pred_region
      %v157 = vld [vmem:[#allocation2] sm:$0xff]
      %v158 = vsel %vm152, %v157, 0.0
      %159 = vadd.xlane.f32.xlu0 %v158
      %v160 = vpop.xlane.xlu0 %159
      %v161 = vrot.slane %v160, 4
      %v162 = vadd.f32 %v160, %v161
      %v163 = vrot.slane %v162, 2
      %v164 = vadd.f32 %v162, %v163
      %v165 = vrot.slane %v164, 1
      %v166 = vadd.f32 %v164, %v165
      %s167 = vtos %v166
      %v168 = vstv %s167
      %vm169 = vcmask 0
      %170 = vst.msk [vmem:[#allocation4] sm:$0x1] %vm169, %v168
    $region29: #{tpu_custom_call.1} parent=1 // pred_fallthru
      _
    // Predicated region
    $region30: #{tpu_custom_call.1} parent=1 // pred_check
      _
    $region31: #{tpu_custom_call.1} parent=1 // pred_check_branch
      %172 = sbr.rel (0) target = $region33
    $region32: #{tpu_custom_call.1} parent=1 // pred_region
      %s174 = ssub.s32 16, 16
      %175 = vsyncadd [#allocation5], %s174
      %s177 = sshll.u32 [#allocation4], 4
      %s178 = int_to_ptr.vmem [resolvable:$true] %s177
      %180 = dma.vmem_to_hbm [thread:$0]  %s178, 16, %s5, [#allocation5]
    $region33: #{tpu_custom_call.1} parent=1 // pred_fallthru
      _
    // Predicated region
    $region34: #{tpu_custom_call.1} parent=1 // pred_check
      _
    $region35: #{tpu_custom_call.1} parent=1 // pred_check_branch
      %182 = sbr.rel (0) target = $region37
    $region36: #{tpu_custom_call.1} parent=1 // pred_region
      %183 = dma.done [#allocation5], 16
    $region37: #{tpu_custom_call.1} parent=1 // pred_fallthru
      _
    %184 = vsyncpa [#allocation5], 1

</llo_original>
